<compile_context>
chip_gen: v7x
topology: tpu7x:2x2x1
jax: 0.10.0
libtpu: 0.0.40
codegen_flags: <defaults>
</compile_context>

<pallas_src>
import jax
import jax.numpy as jnp
import numpy as np
from jax import lax
from jax.experimental import pallas as pl
from jax.experimental.pallas import tpu as pltpu

LANE = 128


def _round_up(x, m):
    return ((x + m - 1) // m) * m


def _vmem_capacity_bytes():
    """Physical VMEM per core (128 MiB v5e/v6e, 64 MiB/TC v7x); conservative fallback."""
    try:
        cap = getattr(pltpu.get_tpu_info(), "vmem_capacity_bytes", None)
        if cap:
            return int(cap)
    except Exception:
        pass
    return 64 << 20


def _pick_tile_h(H, W, Wp, cin_p, cout_p, itemsize, budget_bytes):
    """Largest divisor TH of H whose per-step working set fits the VMEM budget.

    For H >= 16, TH is capped at H//2 so the in-kernel prefetch chain has >= 2
    row-tiles per image to overlap the slab DMA with compute (and v7x megacore
    sees >= 2 grid steps even for N == 1).  The working set counts the
    double-buffered input slab, the rolled W-shift planes, the depthwise
    accumulator, the f32 activations and the Pallas-pipelined output block.
    """
    max_th = H if H < 16 else H // 2
    best = 1
    for th in range(1, max_th + 1):
        if H % th:
            continue
        slab = (th + 2) * Wp * cin_p * itemsize
        work = (
            2 * slab                                   # double-buffered halo slab
            + 3 * slab                                 # loaded slab + 2 rolled planes
            + th * W * cin_p * itemsize                # depthwise accumulator
            + th * W * cin_p * 4                       # f32 bias+ReLU activations
            + 3 * th * W * cout_p * 4                  # matmul out + pipelined o block
            + 2 * (9 * cin_p + cin_p * cout_p) * itemsize
            + 2 * (cin_p + cout_p) * 4                 # weights / biases (double-buffered)
        )
        if work <= budget_bytes:
            best = th
    return best


def _dsconv_kernel(xp_hbm, dww_ref, b1_ref, pww_ref, b2_ref, o_ref, xbuf, sem):
    """Fused depthwise(3x3, s=1) + BN1 bias/ReLU + pointwise(1x1) + BN2 bias/ReLU.

    xp_hbm : (N, H+2, Wp, Cin_p)   zero-padded NHWC input, resident in HBM
    dww_ref: (9, Cin_p)            flat depthwise taps (BN1 scale folded in)
    b1_ref : (1, Cin_p)            folded BN1 bias
    pww_ref: (Cin_p, Cout_p)       pointwise weights (BN2 scale folded in)
    b2_ref : (1, Cout_p)           folded BN2 bias
    o_ref  : (1, TH, W, Cout_p)    output tile (lane-dense: Cout_p % 128 == 0)
    xbuf   : (2, TH+2, Wp, Cin_p)  double-buffered VMEM slab
    sem    : DMA semaphores, one per slab buffer
    """
    n = pl.program_id(0)
    i = pl.program_id(1)
    nH = pl.num_programs(1)
    TH = o_ref.shape[1]
    W = o_ref.shape[2]
    Wp = xbuf.shape[2]
    cin_p = xbuf.shape[3]
    cout_p = o_ref.shape[3]

    def slab_copy(row_blk, slot):
        # Padded rows [row_blk*TH, row_blk*TH + TH + 2) of image n.
        row0 = pl.multiple_of(row_blk * TH, TH)
        return pltpu.make_async_copy(
            xp_hbm.at[n, pl.ds(row0, TH + 2)], xbuf.at[slot], sem.at[slot])

    slot = lax.rem(i, 2)

    # Prime the pipeline at the start of this image's row loop.  The prefetch
    # chain never crosses the batch axis, so batch stays "parallel" while the
    # row axis is "arbitrary" (executed in order on one core).
    @pl.when(i == 0)
    def _():
        slab_copy(i, 0).start()          # i == 0 here

    # Prefetch the next row-tile of the SAME image while computing this one
    # (scalar index math happens before the wait below).
    @pl.when(i + 1 < nH)
    def _():
        slab_copy(i + 1, 1 - slot).start()

    # Wait for this step's slab (issued at the previous step, or just primed).
    slab_copy(i, slot).wait()
    xp = xbuf[slot]                                     # (TH+2, Wp, Cin_p)

    # Three W-shifted planes of the 3x3 stencil.  dx=0 is an aligned slice;
    # dx=1,2 use XLU sublane rotations (pltpu.roll follows jnp.roll semantics,
    # so a positive shift of Wp-dx brings column j+dx to column j) followed by
    # an aligned [:, :W] slice, instead of sublane-misaligned slices that force
    # relayout copies through the vld/vst slots.
    planes = [xp[:, :W, :]]
    for dx in (1, 2):
        planes.append(pltpu.roll(xp, shift=Wp - dx, axis=1)[:, :W, :])

    # Depthwise 3x3 as 9 shifted multiply-adds on the VPU (BN1 scale pre-folded).
    # Flat (9, Cin_p) weights => each tap is a single aligned row read; the
    # accumulator is initialized from tap 0 instead of zeros + add.
    acc = planes[0][0:TH] * dww_ref[0]
    for t in range(1, 9):
        dy, dx = divmod(t, 3)
        acc = acc + planes[dx][dy:dy + TH] * dww_ref[t]

    # BN1 bias + ReLU in f32.
    y = jnp.maximum(acc.astype(jnp.float32) + b1_ref[0], 0.0)

    # Pointwise 1x1 conv == lane-dense MXU matmul (TH*W, Cin_p) x (Cin_p, Cout_p),
    # f32 accumulation regardless of compute dtype.
    y2 = jnp.dot(y.reshape(TH * W, cin_p).astype(pww_ref.dtype), pww_ref[...],
                 preferred_element_type=jnp.float32)

    # BN2 bias + ReLU.
    y2 = jnp.maximum(y2 + b2_ref[0], 0.0)
    o_ref[0] = y2.reshape(TH, W, cout_p)


def depthwise_separable_conv(x_nchw, params, eps=1e-5, compute_dtype=jnp.float32):
    """NCHW in, NCHW out (matches the PyTorch module); eval-mode BN; stride=1 only.

    compute_dtype: dtype of the in-kernel input slab and conv weights.  Default
    f32 (keeps the tight reference tolerance; recommended on v5e, which has no
    bf16 VALU).  On v6e/v7x pass jnp.bfloat16 to halve slab DMA / VMEM and use
    native bf16 VPU+MXU rates; accumulation, bias and ReLU stay f32.
    """
    N, Cin, H, W = x_nchw.shape
    Cout = params["pw_w"].shape[0]
    cin_p = _round_up(Cin, LANE)
    cout_p = _round_up(Cout, LANE)
    Wp = _round_up(W + 2, 8)              # halo'd width padded to a sublane multiple
    cdtype = jnp.dtype(compute_dtype)

    # Fold eval-mode BatchNorm: scales into the conv weights, keep only biases.
    inv1 = params["g1"] / jnp.sqrt(params["v1"] + eps)
    b1 = params["b1"] - params["m1"] * inv1
    inv2 = params["g2"] / jnp.sqrt(params["v2"] + eps)
    b2 = params["b2"] - params["m2"] * inv2

    dww = jnp.transpose(params["dw_w"][:, 0], (1, 2, 0)) * inv1          # (3,3,Cin)
    pww = jnp.transpose(params["pw_w"][:, :, 0, 0], (1, 0)) * inv2       # (Cin,Cout)

    # Flat (9, Cin_p) depthwise tile (tap t = 3*dy + dx); lane-pad channels to 128.
    dww_p = jnp.pad(dww.reshape(9, Cin), ((0, 0), (0, cin_p - Cin))).astype(cdtype)
    b1_p = jnp.pad(b1, (0, cin_p - Cin)).reshape(1, cin_p).astype(jnp.float32)
    pww_p = jnp.pad(pww, ((0, cin_p - Cin), (0, cout_p - Cout))).astype(cdtype)
    b2_p = jnp.pad(b2, (0, cout_p - Cout)).reshape(1, cout_p).astype(jnp.float32)

    # NCHW -> NHWC once (interface requirement); halo + lane pad fuse into the
    # same XLA copy.
    # TODO(synk): when this block is chained, keep activations NHWC+lane-padded
    # end-to-end and zero the halo in-kernel so the transpose/pad HBM pass
    # happens once per model, not per layer.
    # TODO(synk): for Cin << 128 the depthwise stage could pack W into the lane
    # dimension instead of running on padded channel lanes.
    x = jnp.transpose(x_nchw, (0, 2, 3, 1))
    xp = jnp.pad(x, ((0, 0), (1, 1), (1, Wp - W - 1), (0, cin_p - Cin))).astype(cdtype)

    # Per-generation sizing: 128 MiB VMEM on v5e/v6e, 64 MiB/TC on v7x.
    vmem_cap = _vmem_capacity_bytes()
    TH = _pick_tile_h(H, W, Wp, cin_p, cout_p, cdtype.itemsize,
                      budget_bytes=vmem_cap // 5)
    nH = H // TH

    out_p = pl.pallas_call(
        _dsconv_kernel,
        out_shape=jax.ShapeDtypeStruct((N, H, W, cout_p), jnp.float32),
        grid_spec=pltpu.PrefetchScalarGridSpec(
            num_scalar_prefetch=0,
            grid=(N, nH),
            in_specs=[
                pl.BlockSpec(memory_space=pl.ANY),                       # slab stays in HBM
                pl.BlockSpec((9, cin_p), lambda n, i: (0, 0)),
                pl.BlockSpec((1, cin_p), lambda n, i: (0, 0)),
                pl.BlockSpec((cin_p, cout_p), lambda n, i: (0, 0)),
                pl.BlockSpec((1, cout_p), lambda n, i: (0, 0)),
            ],
            out_specs=pl.BlockSpec((1, TH, W, cout_p), lambda n, i: (n, i, 0, 0)),
            scratch_shapes=[
                pltpu.VMEM((2, TH + 2, Wp, cin_p), cdtype),
                pltpu.SemaphoreType.DMA((2,)),
            ],
        ),
        compiler_params=pltpu.CompilerParams(
            dimension_semantics=("parallel", "arbitrary"),
            vmem_limit_bytes=vmem_cap // 2,
        ),
    )(xp, dww_p, b1_p, pww_p, b2_p)

    out = out_p[..., :Cout]                       # drop lane padding
    return jnp.transpose(out, (0, 3, 1, 2))       # back to NCHW


def _reference(x_nchw, params, eps=1e-5):
    """Pure-JAX reference (same math) for the correctness check."""
    Cin = x_nchw.shape[1]
    x = jnp.transpose(x_nchw, (0, 2, 3, 1)).astype(jnp.float32)          # NHWC
    dww = jnp.transpose(params["dw_w"][:, 0], (1, 2, 0)).reshape(3, 3, 1, Cin)
    dn = lax.conv_dimension_numbers(x.shape, dww.shape, ("NHWC", "HWIO", "NHWC"))
    y = lax.conv_general_dilated(x, dww, (1, 1), "SAME",
                                 dimension_numbers=dn, feature_group_count=Cin)
    inv1 = params["g1"] / jnp.sqrt(params["v1"] + eps)
    y = jnp.maximum(y * inv1 + (params["b1"] - params["m1"] * inv1), 0.0)
    pww = jnp.transpose(params["pw_w"][:, :, 0, 0], (1, 0))              # (Cin, Cout)
    z = jnp.einsum("nhwc,co->nhwo", y, pww)
    inv2 = params["g2"] / jnp.sqrt(params["v2"] + eps)
    z = jnp.maximum(z * inv2 + (params["b2"] - params["m2"] * inv2), 0.0)
    return jnp.transpose(z, (0, 3, 1, 2))                                # NCHW


def make_params(key, in_channels, out_channels):
    """Deterministic synthetic parameters matching the PyTorch module's shapes."""
    k_dw, k_pw = jax.random.split(key)
    return {
        "dw_w": jax.random.normal(k_dw, (in_channels, 1, 3, 3), jnp.float32) * 0.2,
        "pw_w": jax.random.normal(k_pw, (out_channels, in_channels, 1, 1), jnp.float32) * 0.2,
        # BN1 (over in_channels)
        "g1": 1.0 + 0.10 * jnp.arange(in_channels, dtype=jnp.float32),
        "b1": 0.05 * jnp.arange(in_channels, dtype=jnp.float32),
        "m1": 0.01 * jnp.arange(in_channels, dtype=jnp.float32),
        "v1": 1.0 + 0.02 * jnp.arange(in_channels, dtype=jnp.float32),
        # BN2 (over out_channels)
        "g2": 1.0 + 0.07 * jnp.arange(out_channels, dtype=jnp.float32),
        "b2": -0.03 * jnp.arange(out_channels, dtype=jnp.float32),
        "m2": 0.02 * jnp.arange(out_channels, dtype=jnp.float32),
        "v2": 1.0 + 0.05 * jnp.arange(out_channels, dtype=jnp.float32),
    }


if __name__ == "__main__":
    N, Cin, Cout, H, W = 2, 4, 8, 16, 16
    key = jax.random.PRNGKey(0)
    kx, kp = jax.random.split(key)
    x = jax.random.normal(kx, (N, Cin, H, W), jnp.float32)
    params = make_params(kp, Cin, Cout)

    out = jax.block_until_ready(depthwise_separable_conv(x, params))
    ref = jax.block_until_ready(_reference(x, params))
    np.testing.assert_allclose(np.asarray(out), np.asarray(ref), rtol=1e-4, atol=1e-4)

    print("KERNEL_OK")
</pallas_src>

<mosaic_0001>
module attributes {stable_mosaic.version = 11 : i64} {
  func.func @_dsconv_kernel(%arg0: i32, %arg1: i32, %arg2: memref<2x18x24x128xf32, #tpu.memory_space<any>>, %arg3: memref<9x128xf32, #tpu.memory_space<vmem>>, %arg4: memref<1x128xf32, #tpu.memory_space<vmem>>, %arg5: memref<128x128xf32, #tpu.memory_space<vmem>>, %arg6: memref<1x128xf32, #tpu.memory_space<vmem>>, %arg7: memref<1x8x16x128xf32, #tpu.memory_space<vmem>>, %arg8: memref<2x10x24x128xf32, #tpu.memory_space<vmem>>, %arg9: memref<2x!tpu.dma_semaphore, #tpu.memory_space<semaphore_mem>>) attributes {dimension_semantics = [#tpu.dimension_semantics<parallel>, #tpu.dimension_semantics<arbitrary>], iteration_bounds = array<i64: 2, 2>, scalar_prefetch = 0 : i64, scratch_operands = 2 : i64, tpu.core_type = #tpu.core_type<tc>, window_params = [{}, {pipeline_mode = #tpu.pipeline_mode<synchronous>, transform_indices = @transform_1, window_bounds = array<i64: 9, 128>}, {pipeline_mode = #tpu.pipeline_mode<synchronous>, transform_indices = @transform_2, window_bounds = array<i64: 1, 128>}, {pipeline_mode = #tpu.pipeline_mode<synchronous>, transform_indices = @transform_3, window_bounds = array<i64: 128, 128>}, {pipeline_mode = #tpu.pipeline_mode<synchronous>, transform_indices = @transform_4, window_bounds = array<i64: 1, 128>}, {transform_indices = @transform_5, window_bounds = array<i64: 1, 8, 16, 128>}]} {
    %c2_i32 = arith.constant 2 : i32
    %0 = arith.remsi %arg1, %c2_i32 : i32
    %c0_i32 = arith.constant 0 : i32
    %1 = arith.cmpi eq, %arg1, %c0_i32 : i32
    %2 = arith.extui %1 : i1 to i32
    %c0_i32_0 = arith.constant 0 : i32
    %3 = arith.cmpi ne, %2, %c0_i32_0 : i32
    scf.if %3 {
      %c8_i32_32 = arith.constant 8 : i32
      %107 = arith.muli %arg1, %c8_i32_32 : i32
      %108 = tpu.assume_multiple %107, 8 : i32
      %c0_i32_33 = arith.constant 0 : i32
      %c0_i32_34 = arith.constant 0 : i32
      %c0_i32_35 = arith.constant 0 : i32
      %c0_i32_36 = arith.constant 0 : i32
      %109 = tpu.memref_slice %arg2[%arg0, %108, %c0_i32_35, %c0_i32_36] : memref<2x18x24x128xf32, #tpu.memory_space<any>> -> memref<1x10x24x128xf32, #tpu.memory_space<any>>
      %110 = tpu.memref_squeeze %109 : memref<1x10x24x128xf32, #tpu.memory_space<any>> -> memref<10x24x128xf32, #tpu.memory_space<any>>
      %c0_i32_37 = arith.constant 0 : i32
      %c0_i32_38 = arith.constant 0 : i32
      %c0_i32_39 = arith.constant 0 : i32
      %111 = tpu.memref_slice %arg8[%c0_i32_33, %c0_i32_37, %c0_i32_38, %c0_i32_39] : memref<2x10x24x128xf32, #tpu.memory_space<vmem>> -> memref<1x10x24x128xf32, #tpu.memory_space<vmem>>
      %112 = tpu.memref_squeeze %111 : memref<1x10x24x128xf32, #tpu.memory_space<vmem>> -> memref<10x24x128xf32, #tpu.memory_space<vmem>>
      %113 = tpu.memref_slice %arg9[%c0_i32_34] : memref<2x!tpu.dma_semaphore, #tpu.memory_space<semaphore_mem>> -> memref<1x!tpu.dma_semaphore, #tpu.memory_space<semaphore_mem>>
      %114 = tpu.memref_squeeze %113 : memref<1x!tpu.dma_semaphore, #tpu.memory_space<semaphore_mem>> -> memref<!tpu.dma_semaphore, #tpu.memory_space<semaphore_mem>>
      tpu.enqueue_dma source(%110 : memref<10x24x128xf32, #tpu.memory_space<any>>) target(%112 : memref<10x24x128xf32, #tpu.memory_space<vmem>>) target_semaphore(%114 : memref<!tpu.dma_semaphore, #tpu.memory_space<semaphore_mem>>)
    } else {
    }
    %c1_i32 = arith.constant 1 : i32
    %4 = arith.addi %arg1, %c1_i32 : i32
    %c2_i32_1 = arith.constant 2 : i32
    %5 = arith.cmpi slt, %4, %c2_i32_1 : i32
    %6 = arith.extui %5 : i1 to i32
    %c0_i32_2 = arith.constant 0 : i32
    %7 = arith.cmpi ne, %6, %c0_i32_2 : i32
    scf.if %7 {
      %c1_i32_32 = arith.constant 1 : i32
      %107 = arith.addi %arg1, %c1_i32_32 : i32
      %c1_i32_33 = arith.constant 1 : i32
      %108 = arith.subi %c1_i32_33, %0 : i32
      %c8_i32_34 = arith.constant 8 : i32
      %109 = arith.muli %107, %c8_i32_34 : i32
      %110 = tpu.assume_multiple %109, 8 : i32
      %c0_i32_35 = arith.constant 0 : i32
      %c0_i32_36 = arith.constant 0 : i32
      %111 = tpu.memref_slice %arg2[%arg0, %110, %c0_i32_35, %c0_i32_36] : memref<2x18x24x128xf32, #tpu.memory_space<any>> -> memref<1x10x24x128xf32, #tpu.memory_space<any>>
      %112 = tpu.memref_squeeze %111 : memref<1x10x24x128xf32, #tpu.memory_space<any>> -> memref<10x24x128xf32, #tpu.memory_space<any>>
      %c0_i32_37 = arith.constant 0 : i32
      %c0_i32_38 = arith.constant 0 : i32
      %c0_i32_39 = arith.constant 0 : i32
      %113 = tpu.memref_slice %arg8[%108, %c0_i32_37, %c0_i32_38, %c0_i32_39] : memref<2x10x24x128xf32, #tpu.memory_space<vmem>> -> memref<1x10x24x128xf32, #tpu.memory_space<vmem>>
      %114 = tpu.memref_squeeze %113 : memref<1x10x24x128xf32, #tpu.memory_space<vmem>> -> memref<10x24x128xf32, #tpu.memory_space<vmem>>
      %115 = tpu.memref_slice %arg9[%108] : memref<2x!tpu.dma_semaphore, #tpu.memory_space<semaphore_mem>> -> memref<1x!tpu.dma_semaphore, #tpu.memory_space<semaphore_mem>>
      %116 = tpu.memref_squeeze %115 : memref<1x!tpu.dma_semaphore, #tpu.memory_space<semaphore_mem>> -> memref<!tpu.dma_semaphore, #tpu.memory_space<semaphore_mem>>
      tpu.enqueue_dma source(%112 : memref<10x24x128xf32, #tpu.memory_space<any>>) target(%114 : memref<10x24x128xf32, #tpu.memory_space<vmem>>) target_semaphore(%116 : memref<!tpu.dma_semaphore, #tpu.memory_space<semaphore_mem>>)
    } else {
    }
    %c8_i32 = arith.constant 8 : i32
    %8 = arith.muli %arg1, %c8_i32 : i32
    %9 = tpu.assume_multiple %8, 8 : i32
    %c0_i32_3 = arith.constant 0 : i32
    %c0_i32_4 = arith.constant 0 : i32
    %10 = tpu.memref_slice %arg2[%arg0, %9, %c0_i32_3, %c0_i32_4] : memref<2x18x24x128xf32, #tpu.memory_space<any>> -> memref<1x10x24x128xf32, #tpu.memory_space<any>>
    %11 = tpu.memref_squeeze %10 : memref<1x10x24x128xf32, #tpu.memory_space<any>> -> memref<10x24x128xf32, #tpu.memory_space<any>>
    %c0_i32_5 = arith.constant 0 : i32
    %c0_i32_6 = arith.constant 0 : i32
    %c0_i32_7 = arith.constant 0 : i32
    %12 = tpu.memref_slice %arg8[%0, %c0_i32_5, %c0_i32_6, %c0_i32_7] : memref<2x10x24x128xf32, #tpu.memory_space<vmem>> -> memref<1x10x24x128xf32, #tpu.memory_space<vmem>>
    %13 = tpu.memref_squeeze %12 : memref<1x10x24x128xf32, #tpu.memory_space<vmem>> -> memref<10x24x128xf32, #tpu.memory_space<vmem>>
    %14 = tpu.memref_slice %arg9[%0] : memref<2x!tpu.dma_semaphore, #tpu.memory_space<semaphore_mem>> -> memref<1x!tpu.dma_semaphore, #tpu.memory_space<semaphore_mem>>
    %15 = tpu.memref_squeeze %14 : memref<1x!tpu.dma_semaphore, #tpu.memory_space<semaphore_mem>> -> memref<!tpu.dma_semaphore, #tpu.memory_space<semaphore_mem>>
    tpu.wait_dma2 semaphore(%15 : memref<!tpu.dma_semaphore, #tpu.memory_space<semaphore_mem>>) src(%11 : memref<10x24x128xf32, #tpu.memory_space<any>>) dst(%13 : memref<10x24x128xf32, #tpu.memory_space<vmem>>)
    %16 = arith.index_cast %0 : i32 to index
    %c0 = arith.constant 0 : index
    %c0_8 = arith.constant 0 : index
    %c0_9 = arith.constant 0 : index
    %17 = vector.load %arg8[%16, %c0, %c0_8, %c0_9] : memref<2x10x24x128xf32, #tpu.memory_space<vmem>>, vector<1x10x24x128xf32>
    %18 = vector.shape_cast %17 : vector<1x10x24x128xf32> to vector<10x24x128xf32>
    %19 = vector.extract_strided_slice %18 {offsets = [0, 0, 0], sizes = [10, 16, 128], strides = [1, 1, 1]} : vector<10x24x128xf32> to vector<10x16x128xf32>
    %c23_i32 = arith.constant 23 : i32
    %20 = tpu.dynamic_rotate %18 by %c23_i32 dim 1 : vector<10x24x128xf32>, i32 -> vector<10x24x128xf32>
    %21 = vector.extract_strided_slice %20 {offsets = [0, 0, 0], sizes = [10, 16, 128], strides = [1, 1, 1]} : vector<10x24x128xf32> to vector<10x16x128xf32>
    %c22_i32 = arith.constant 22 : i32
    %22 = tpu.dynamic_rotate %18 by %c22_i32 dim 1 : vector<10x24x128xf32>, i32 -> vector<10x24x128xf32>
    %23 = vector.extract_strided_slice %22 {offsets = [0, 0, 0], sizes = [10, 16, 128], strides = [1, 1, 1]} : vector<10x24x128xf32> to vector<10x16x128xf32>
    %24 = vector.extract_strided_slice %19 {offsets = [0, 0, 0], sizes = [8, 16, 128], strides = [1, 1, 1]} : vector<10x16x128xf32> to vector<8x16x128xf32>
    %c0_10 = arith.constant 0 : index
    %c0_11 = arith.constant 0 : index
    %25 = vector.load %arg3[%c0_10, %c0_11] : memref<9x128xf32, #tpu.memory_space<vmem>>, vector<1x128xf32>
    %26 = vector.shape_cast %25 : vector<1x128xf32> to vector<128xf32>
    %27 = vector.shape_cast %26 : vector<128xf32> to vector<1x1x128xf32>
    %28 = vector.broadcast %27 : vector<1x1x128xf32> to vector<8x16x128xf32>
    %29 = arith.mulf %24, %28 : vector<8x16x128xf32>
    %30 = vector.extract_strided_slice %21 {offsets = [0, 0, 0], sizes = [8, 16, 128], strides = [1, 1, 1]} : vector<10x16x128xf32> to vector<8x16x128xf32>
    %c1 = arith.constant 1 : index
    %c0_12 = arith.constant 0 : index
    %31 = vector.load %arg3[%c1, %c0_12] : memref<9x128xf32, #tpu.memory_space<vmem>>, vector<1x128xf32>
    %32 = vector.shape_cast %31 : vector<1x128xf32> to vector<128xf32>
    %33 = vector.shape_cast %32 : vector<128xf32> to vector<1x1x128xf32>
    %34 = vector.broadcast %33 : vector<1x1x128xf32> to vector<8x16x128xf32>
    %35 = arith.mulf %30, %34 : vector<8x16x128xf32>
    %36 = arith.addf %29, %35 : vector<8x16x128xf32>
    %37 = vector.extract_strided_slice %23 {offsets = [0, 0, 0], sizes = [8, 16, 128], strides = [1, 1, 1]} : vector<10x16x128xf32> to vector<8x16x128xf32>
    %c2 = arith.constant 2 : index
    %c0_13 = arith.constant 0 : index
    %38 = vector.load %arg3[%c2, %c0_13] : memref<9x128xf32, #tpu.memory_space<vmem>>, vector<1x128xf32>
    %39 = vector.shape_cast %38 : vector<1x128xf32> to vector<128xf32>
    %40 = vector.shape_cast %39 : vector<128xf32> to vector<1x1x128xf32>
    %41 = vector.broadcast %40 : vector<1x1x128xf32> to vector<8x16x128xf32>
    %42 = arith.mulf %37, %41 : vector<8x16x128xf32>
    %43 = arith.addf %36, %42 : vector<8x16x128xf32>
    %44 = vector.extract_strided_slice %19 {offsets = [1, 0, 0], sizes = [8, 16, 128], strides = [1, 1, 1]} : vector<10x16x128xf32> to vector<8x16x128xf32>
    %c3 = arith.constant 3 : index
    %c0_14 = arith.constant 0 : index
    %45 = vector.load %arg3[%c3, %c0_14] : memref<9x128xf32, #tpu.memory_space<vmem>>, vector<1x128xf32>
    %46 = vector.shape_cast %45 : vector<1x128xf32> to vector<128xf32>
    %47 = vector.shape_cast %46 : vector<128xf32> to vector<1x1x128xf32>
    %48 = vector.broadcast %47 : vector<1x1x128xf32> to vector<8x16x128xf32>
    %49 = arith.mulf %44, %48 : vector<8x16x128xf32>
    %50 = arith.addf %43, %49 : vector<8x16x128xf32>
    %51 = vector.extract_strided_slice %21 {offsets = [1, 0, 0], sizes = [8, 16, 128], strides = [1, 1, 1]} : vector<10x16x128xf32> to vector<8x16x128xf32>
    %c4 = arith.constant 4 : index
    %c0_15 = arith.constant 0 : index
    %52 = vector.load %arg3[%c4, %c0_15] : memref<9x128xf32, #tpu.memory_space<vmem>>, vector<1x128xf32>
    %53 = vector.shape_cast %52 : vector<1x128xf32> to vector<128xf32>
    %54 = vector.shape_cast %53 : vector<128xf32> to vector<1x1x128xf32>
    %55 = vector.broadcast %54 : vector<1x1x128xf32> to vector<8x16x128xf32>
    %56 = arith.mulf %51, %55 : vector<8x16x128xf32>
    %57 = arith.addf %50, %56 : vector<8x16x128xf32>
    %58 = vector.extract_strided_slice %23 {offsets = [1, 0, 0], sizes = [8, 16, 128], strides = [1, 1, 1]} : vector<10x16x128xf32> to vector<8x16x128xf32>
    %c5 = arith.constant 5 : index
    %c0_16 = arith.constant 0 : index
    %59 = vector.load %arg3[%c5, %c0_16] : memref<9x128xf32, #tpu.memory_space<vmem>>, vector<1x128xf32>
    %60 = vector.shape_cast %59 : vector<1x128xf32> to vector<128xf32>
    %61 = vector.shape_cast %60 : vector<128xf32> to vector<1x1x128xf32>
    %62 = vector.broadcast %61 : vector<1x1x128xf32> to vector<8x16x128xf32>
    %63 = arith.mulf %58, %62 : vector<8x16x128xf32>
    %64 = arith.addf %57, %63 : vector<8x16x128xf32>
    %65 = vector.extract_strided_slice %19 {offsets = [2, 0, 0], sizes = [8, 16, 128], strides = [1, 1, 1]} : vector<10x16x128xf32> to vector<8x16x128xf32>
    %c6 = arith.constant 6 : index
    %c0_17 = arith.constant 0 : index
    %66 = vector.load %arg3[%c6, %c0_17] : memref<9x128xf32, #tpu.memory_space<vmem>>, vector<1x128xf32>
    %67 = vector.shape_cast %66 : vector<1x128xf32> to vector<128xf32>
    %68 = vector.shape_cast %67 : vector<128xf32> to vector<1x1x128xf32>
    %69 = vector.broadcast %68 : vector<1x1x128xf32> to vector<8x16x128xf32>
    %70 = arith.mulf %65, %69 : vector<8x16x128xf32>
    %71 = arith.addf %64, %70 : vector<8x16x128xf32>
    %72 = vector.extract_strided_slice %21 {offsets = [2, 0, 0], sizes = [8, 16, 128], strides = [1, 1, 1]} : vector<10x16x128xf32> to vector<8x16x128xf32>
    %c7 = arith.constant 7 : index
    %c0_18 = arith.constant 0 : index
    %73 = vector.load %arg3[%c7, %c0_18] : memref<9x128xf32, #tpu.memory_space<vmem>>, vector<1x128xf32>
    %74 = vector.shape_cast %73 : vector<1x128xf32> to vector<128xf32>
    %75 = vector.shape_cast %74 : vector<128xf32> to vector<1x1x128xf32>
    %76 = vector.broadcast %75 : vector<1x1x128xf32> to vector<8x16x128xf32>
    %77 = arith.mulf %72, %76 : vector<8x16x128xf32>
    %78 = arith.addf %71, %77 : vector<8x16x128xf32>
    %79 = vector.extract_strided_slice %23 {offsets = [2, 0, 0], sizes = [8, 16, 128], strides = [1, 1, 1]} : vector<10x16x128xf32> to vector<8x16x128xf32>
    %c8 = arith.constant 8 : index
    %c0_19 = arith.constant 0 : index
    %80 = vector.load %arg3[%c8, %c0_19] : memref<9x128xf32, #tpu.memory_space<vmem>>, vector<1x128xf32>
    %81 = vector.shape_cast %80 : vector<1x128xf32> to vector<128xf32>
    %82 = vector.shape_cast %81 : vector<128xf32> to vector<1x1x128xf32>
    %83 = vector.broadcast %82 : vector<1x1x128xf32> to vector<8x16x128xf32>
    %84 = arith.mulf %79, %83 : vector<8x16x128xf32>
    %85 = arith.addf %78, %84 : vector<8x16x128xf32>
    %c0_20 = arith.constant 0 : index
    %c0_21 = arith.constant 0 : index
    %86 = vector.load %arg4[%c0_20, %c0_21] : memref<1x128xf32, #tpu.memory_space<vmem>>, vector<1x128xf32>
    %87 = vector.shape_cast %86 : vector<1x128xf32> to vector<128xf32>
    %88 = vector.shape_cast %87 : vector<128xf32> to vector<1x1x128xf32>
    %89 = vector.broadcast %88 : vector<1x1x128xf32> to vector<8x16x128xf32>
    %90 = arith.addf %85, %89 : vector<8x16x128xf32>
    %cst = arith.constant 0.000000e+00 : f32
    %91 = vector.broadcast %cst : f32 to vector<8x16x128xf32>
    %92 = arith.maximumf %90, %91 : vector<8x16x128xf32>
    %93 = vector.shape_cast %92 : vector<8x16x128xf32> to vector<128x128xf32>
    %c0_22 = arith.constant 0 : index
    %c0_23 = arith.constant 0 : index
    %94 = vector.load %arg5[%c0_22, %c0_23] : memref<128x128xf32, #tpu.memory_space<vmem>>, vector<128x128xf32>
    %cst_24 = arith.constant dense<0.000000e+00> : vector<128x128xf32>
    %95 = tpu.matmul %93, %94, %cst_24 {dimension_numbers = #tpu.dot_dimension_numbers<[1], [0], [0], [1], [0, 0, 1, 1], [], []>} : vector<128x128xf32>, vector<128x128xf32>, vector<128x128xf32> -> vector<128x128xf32>
    %c0_25 = arith.constant 0 : index
    %c0_26 = arith.constant 0 : index
    %96 = vector.load %arg6[%c0_25, %c0_26] : memref<1x128xf32, #tpu.memory_space<vmem>>, vector<1x128xf32>
    %97 = vector.shape_cast %96 : vector<1x128xf32> to vector<128xf32>
    %98 = vector.shape_cast %97 : vector<128xf32> to vector<1x128xf32>
    %99 = vector.broadcast %98 : vector<1x128xf32> to vector<128x128xf32>
    %100 = arith.addf %95, %99 : vector<128x128xf32>
    %cst_27 = arith.constant 0.000000e+00 : f32
    %101 = vector.broadcast %cst_27 : f32 to vector<128x128xf32>
    %102 = arith.maximumf %100, %101 : vector<128x128xf32>
    %103 = vector.shape_cast %102 : vector<128x128xf32> to vector<8x16x128xf32>
    %c0_28 = arith.constant 0 : index
    %c0_29 = arith.constant 0 : index
    %c0_30 = arith.constant 0 : index
    %c0_31 = arith.constant 0 : index
    %104 = vector.load %arg7[%c0_28, %c0_29, %c0_30, %c0_31] : memref<1x8x16x128xf32, #tpu.memory_space<vmem>>, vector<1x8x16x128xf32>
    %105 = vector.shape_cast %104 : vector<1x8x16x128xf32> to vector<8x16x128xf32>
    %106 = vector.shape_cast %103 : vector<8x16x128xf32> to vector<1x8x16x128xf32>
    tpu.vector_store %arg7[%c0_28, %c0_29, %c0_30, %c0_31], %106 {strides = array<i32>} : memref<1x8x16x128xf32, #tpu.memory_space<vmem>>, vector<1x8x16x128xf32>,
    return
  }
  func.func @transform_1(%arg0: i32, %arg1: i32) -> (i32, i32) {
    %c0_i32 = arith.constant 0 : i32
    %c0_i32_0 = arith.constant 0 : i32
    %c0_i32_1 = arith.constant 0 : i32
    return %c0_i32, %c0_i32_0 : i32, i32
  }
  func.func @transform_2(%arg0: i32, %arg1: i32) -> (i32, i32) {
    %c0_i32 = arith.constant 0 : i32
    %c0_i32_0 = arith.constant 0 : i32
    %c0_i32_1 = arith.constant 0 : i32
    return %c0_i32, %c0_i32_0 : i32, i32
  }
  func.func @transform_3(%arg0: i32, %arg1: i32) -> (i32, i32) {
    %c0_i32 = arith.constant 0 : i32
    %c0_i32_0 = arith.constant 0 : i32
    %c0_i32_1 = arith.constant 0 : i32
    return %c0_i32, %c0_i32_0 : i32, i32
  }
  func.func @transform_4(%arg0: i32, %arg1: i32) -> (i32, i32) {
    %c0_i32 = arith.constant 0 : i32
    %c0_i32_0 = arith.constant 0 : i32
    %c0_i32_1 = arith.constant 0 : i32
    return %c0_i32, %c0_i32_0 : i32, i32
  }
  func.func @transform_5(%arg0: i32, %arg1: i32) -> (i32, i32, i32, i32) {
    %c0_i32 = arith.constant 0 : i32
    %c0_i32_0 = arith.constant 0 : i32
    %c0_i32_1 = arith.constant 0 : i32
    return %arg0, %arg1, %c0_i32, %c0_i32_0 : i32, i32, i32, i32
  }
}

</mosaic_0001>

<llo_original>
// kernel: tpu_custom_call.1
$region0: #{tpu_custom_call.1}
  #allocation0 [shape = 'u32[]', space=smem, size = 0x4, offset = 0x4, fixed_abs, tag = 'smem constant byte address 0x4 - core index']
  #allocation1 [shape = 'u32[144,128]{1,0:T(1,128)}', space=vmem, size = 0x12000, scoped, tag = 'internal scratch']
  #allocation2 [shape = 'f32[2,10,24,128]{3,2,1,0:T(8,128)}', space=vmem, size = 0x3c000, scoped, tag = 'scratch operand']
  #allocation3 [shape = 's32[2]{0}', space=sflag, size = 0x8, scoped, tag = 'scratch operand']
  #allocation10 [shape = 's32[]', space=sflag, size = 0x4, offset = 0, fixed_abs, tag = 'sflag constant byte address 0x0 - dummy sync flag']
  #allocation11 [shape = 's32[]', space=sflag, size = 0x4, offset = 0, fixed_abs, tag = 'sflag constant byte address 0x0 - dummy sync flag']
  #allocation12 [shape = 'u32[]', space=smem, size = 0x4, offset = 0x44, fixed_abs, tag = 'smem constant byte address 0x44 - assertion arg 0']
  #allocation13 [shape = 'u32[]', space=smem, size = 0x4, offset = 0x48, fixed_abs, tag = 'smem constant byte address 0x48 - assertion arg 1']
  #allocation14 [shape = 's32[]', space=sflag, size = 0x4, offset = 0, fixed_abs, tag = 'sflag constant byte address 0x0 - dummy sync flag']
  #allocation15 [shape = 's32[]', space=sflag, size = 0x4, offset = 0, fixed_abs, tag = 'sflag constant byte address 0x0 - dummy sync flag']
  %s0 = inlined_call_operand.hbm [shape: f32[2,18,24,128], index: 0, kind: input, shape index: {}]
  %s1 = inlined_call_operand.hbm [shape: f32[9,128], index: 1, kind: input, shape index: {}]
  %s2 = inlined_call_operand.vmem [shape: f32[1,128], index: 2, kind: input, shape index: {}]
  %s3 = inlined_call_operand.hbm [shape: f32[128,128], index: 3, kind: input, shape index: {}]
  %s4 = inlined_call_operand.vmem [shape: f32[1,128], index: 4, kind: input, shape index: {}]
  %s5 = inlined_call_operand.hbm [shape: f32[2,16,16,128], index: 5, kind: output, shape index: {}]
  %s6 = sld [smem:[#allocation0]]
  $region73: #{tpu_custom_call.1} parent=0
    _
  %s8 = ssub.s32 1, %s6
  %s9 = scalar_select 0, %s8, %s6
  $region1: #{tpu_custom_call.1} parent=0
    #allocation4 [shape = 'u8[8192]{0}', space=vmem, size = 0x2000, scoped, tag = 'input window, operand 1, single buffered']
    #allocation5 [shape = 's32[2]{0}', space=sflag, size = 0x8, scoped, tag = 'scoped memory for tpu_custom_call.1']
    #allocation6 [shape = 's32[2]{0}', space=sflag, size = 0x8, scoped, tag = 'scoped memory for tpu_custom_call.1']
    #allocation7 [shape = 'u8[65536]{0}', space=vmem, size = 0x10000, scoped, tag = 'input window, operand 3, single buffered']
    #allocation8 [shape = 's32[1]{0}', space=sflag, size = 0x4, scoped, tag = 'scoped memory for tpu_custom_call.1']
    #allocation9 [shape = 'u8[131072]{0}', space=vmem, size = 0x20000, scoped, tag = 'output window, operand 0']
    %10 = vsyncpa [#allocation5], 0
    %11 = vsyncpa [#allocation8], 0
    %12 = vsyncpa [#allocation6], 0
    %s13 = scalar_lea.sflag [#allocation6], 1
    %14 = vsyncpa %s13, 0
    loop: start=0, step=1, limit=6
    $region2: #{tpu_custom_call.1} parent=1 // loop_pre_header
      _
    $region3: #{tpu_custom_call.1} parent=1 // loop_header
      %s16 = sphi 0, %s20
      %p17 = scmp.ge.s32.totalorder %s16, 6
      %s23 = sphi 0, %s35
      %s24 = sphi 0, %s31
      %s25 = sphi 0, %s23
      %s26 = sphi 0, %s24
      %s27 = sphi 0, %s25
      %s28 = sphi 0, %s26
      %s36 = sphi 0, %s36
      %s38 = sphi 0, %s36
      %s39 = sphi 0, %s38
      %s53 = sphi 0, %s39
      %s57 = sphi 0, %s57
      %s59 = sphi 0, %s57
      %s60 = sphi 0, %s59
      %s74 = sphi 0, %s60
      %s78 = sphi 0, %s78
      %s80 = sphi 0, %s78
      %s81 = sphi 0, %s80
      %s95 = sphi 0, %s81
      %s99 = sphi 0, %s99
      %s101 = sphi 0, %s99
      %s102 = sphi 0, %s101
      %s116 = sphi 0, %s102
      %s124 = sphi 0, %s126
      %s127 = sphi 0, %s124
      %s128 = sphi 0, %s127
      %s144 = sphi 0, %s128
    $region4: #{tpu_custom_call.1} parent=1 // loop_header_branch
      %19 = sbr.rel (%p17) target = $region8
    $region5: #{tpu_custom_call.1} parent=1 // loop_body
      %s21 = ssub.s32 %s16, 1
      %s22 = ssub.s32 %s16, 2
      %s29 = sadd.s32 1, %s24
      %p30 = scmp.ge.s32.totalorder %s29, 2
      %s31 = scalar_select %p30, 0, %s29
      %s32 = sadd.s32 1, %s23
      %s33 = scalar_select %p30, %s32, %s23
      %p34 = scmp.ge.s32.totalorder %s33, 2
      %s35 = scalar_select %p34, 0, %s33
      %s37 = sadd.s32 %s36, 1
      %p40 = scmp.eq.s32.totalorder %s16, 3
      %p41 = scmp.ne.s32.totalorder %s36, %s38
      %p42 = scmp.eq.s32.totalorder %s16, 0
      %p43 = por %p41, %p42
      %p44 = scmp.ne.s32.totalorder %s36, %s38
      %p45 = scmp.eq.s32.totalorder %s21, 3
      %p46 = por %p44, %p45
      %p47 = scmp.ne.s32.totalorder %s38, %s39
      %p48 = scmp.eq.s32.totalorder %s21, 0
      %p49 = por %p47, %p48
      %p50 = scmp.ne.s32.totalorder %s38, %s39
      %p51 = scmp.eq.s32.totalorder %s22, 3
      %p52 = por %p50, %p51
      %p54 = scmp.ne.s32.totalorder %s39, %s53
      %p55 = scmp.eq.s32.totalorder %s22, 0
      %p56 = por %p54, %p55
      %s58 = sadd.s32 %s57, 1
      %p61 = scmp.eq.s32.totalorder %s16, 3
      %p62 = scmp.ne.s32.totalorder %s57, %s59
      %p63 = scmp.eq.s32.totalorder %s16, 0
      %p64 = por %p62, %p63
      %p65 = scmp.ne.s32.totalorder %s57, %s59
      %p66 = scmp.eq.s32.totalorder %s21, 3
      %p67 = por %p65, %p66
      %p68 = scmp.ne.s32.totalorder %s59, %s60
      %p69 = scmp.eq.s32.totalorder %s21, 0
      %p70 = por %p68, %p69
      %p71 = scmp.ne.s32.totalorder %s59, %s60
      %p72 = scmp.eq.s32.totalorder %s22, 3
      %p73 = por %p71, %p72
      %p75 = scmp.ne.s32.totalorder %s60, %s74
      %p76 = scmp.eq.s32.totalorder %s22, 0
      %p77 = por %p75, %p76
      %s79 = sadd.s32 %s78, 1
      %p82 = scmp.eq.s32.totalorder %s16, 3
      %p83 = scmp.ne.s32.totalorder %s78, %s80
      %p84 = scmp.eq.s32.totalorder %s16, 0
      %p85 = por %p83, %p84
      %p86 = scmp.ne.s32.totalorder %s78, %s80
      %p87 = scmp.eq.s32.totalorder %s21, 3
      %p88 = por %p86, %p87
      %p89 = scmp.ne.s32.totalorder %s80, %s81
      %p90 = scmp.eq.s32.totalorder %s21, 0
      %p91 = por %p89, %p90
      %p92 = scmp.ne.s32.totalorder %s80, %s81
      %p93 = scmp.eq.s32.totalorder %s22, 3
      %p94 = por %p92, %p93
      %p96 = scmp.ne.s32.totalorder %s81, %s95
      %p97 = scmp.eq.s32.totalorder %s22, 0
      %p98 = por %p96, %p97
      %s100 = sadd.s32 %s99, 1
      %p103 = scmp.eq.s32.totalorder %s16, 3
      %p104 = scmp.ne.s32.totalorder %s99, %s101
      %p105 = scmp.eq.s32.totalorder %s16, 0
      %p106 = por %p104, %p105
      %p107 = scmp.ne.s32.totalorder %s99, %s101
      %p108 = scmp.eq.s32.totalorder %s21, 3
      %p109 = por %p107, %p108
      %p110 = scmp.ne.s32.totalorder %s101, %s102
      %p111 = scmp.eq.s32.totalorder %s21, 0
      %p112 = por %p110, %p111
      %p113 = scmp.ne.s32.totalorder %s101, %s102
      %p114 = scmp.eq.s32.totalorder %s22, 3
      %p115 = por %p113, %p114
      %p117 = scmp.ne.s32.totalorder %s102, %s116
      %p118 = scmp.eq.s32.totalorder %s22, 0
      %p119 = por %p117, %p118
      %s120 = ssub.s32 %s23, %s35
      %s121 = ssub.s32 %s24, %s31
      %s122 = sor.u32 %s120, %s121
      %p123 = scmp.eq.s32.totalorder %s122, 0
      %s125 = sadd.s32 %s124, 1
      %s126 = scalar_select %p123, %s124, %s125
      %p129 = pneg %p123
      %p130 = scmp.eq.s32.totalorder %s16, 3
      %p131 = por %p129, %p130
      %p132 = scmp.ne.s32.totalorder %s124, %s127
      %p133 = scmp.eq.s32.totalorder %s16, 0
      %p134 = por %p132, %p133
      %p135 = scmp.ne.s32.totalorder %s124, %s127
      %p136 = scmp.eq.s32.totalorder %s21, 3
      %p137 = por %p135, %p136
      %p138 = scmp.ne.s32.totalorder %s127, %s128
      %p139 = scmp.eq.s32.totalorder %s21, 0
      %p140 = por %p138, %p139
      %p141 = scmp.ne.s32.totalorder %s127, %s128
      %p142 = scmp.eq.s32.totalorder %s22, 3
      %p143 = por %p141, %p142
      %p145 = scmp.ne.s32.totalorder %s128, %s144
      %p146 = scmp.eq.s32.totalorder %s22, 0
      %p147 = por %p145, %p146
      %p148 = scmp.le.s32.totalorder 1, %s16
      %p149 = scmp.lt.s32.totalorder %s16, 5
      %p150 = pnand %p148, %p149
      %p151 = pneg %p150
      // Predicated region
      $region9: #{tpu_custom_call.1} parent=5 // pred_check
        _
      $region10: #{tpu_custom_call.1} parent=5 // pred_check_branch
        %153 = sbr.rel (%p150) target = $region12
      $region11: #{tpu_custom_call.1} parent=5 // pred_region
        %s154 = ssub.s32 %s16, 1
        // Predicated region
        $region13: #{tpu_custom_call.1} parent=11 // pred_check
          %p155 = pneg %p49
        $region14: #{tpu_custom_call.1} parent=11 // pred_check_branch
          %157 = sbr.rel (%p155) target = $region16
        $region15: #{tpu_custom_call.1} parent=11 // pred_region
          %s159 = ssub.s32 256, 256
          %160 = vsyncadd [#allocation5], %s159
          %s161 = sshll.u32 [#allocation4], 4
          %s162 = int_to_ptr.vmem [resolvable:$true] %s161
          %167 = dma.hbm_to_vmem [thread:$0]  %s1, 256, %s162, [#allocation5], 128, 128, 8
        $region16: #{tpu_custom_call.1} parent=11 // pred_fallthru
          _
        // Predicated region
        $region17: #{tpu_custom_call.1} parent=11 // pred_check
          %p168 = pneg %p70
        $region18: #{tpu_custom_call.1} parent=11 // pred_check_branch
          %170 = sbr.rel (%p168) target = $region20
        $region19: #{tpu_custom_call.1} parent=11 // pred_region
          _
        $region20: #{tpu_custom_call.1} parent=11 // pred_fallthru
          _
        // Predicated region
        $region21: #{tpu_custom_call.1} parent=11 // pred_check
          %p171 = pneg %p91
        $region22: #{tpu_custom_call.1} parent=11 // pred_check_branch
          %173 = sbr.rel (%p171) target = $region24
        $region23: #{tpu_custom_call.1} parent=11 // pred_region
          %s175 = ssub.s32 2048, 2048
          %176 = vsyncadd [#allocation8], %s175
          %s177 = sshll.u32 [#allocation7], 4
          %s178 = int_to_ptr.vmem [resolvable:$true] %s177
          %183 = dma.hbm_to_vmem [thread:$0]  %s3, 2048, %s178, [#allocation8], 128, 128, 8
        $region24: #{tpu_custom_call.1} parent=11 // pred_fallthru
          _
        // Predicated region
        $region25: #{tpu_custom_call.1} parent=11 // pred_check
          %p184 = pneg %p112
        $region26: #{tpu_custom_call.1} parent=11 // pred_check_branch
          %186 = sbr.rel (%p184) target = $region28
        $region27: #{tpu_custom_call.1} parent=11 // pred_region
          _
        $region28: #{tpu_custom_call.1} parent=11 // pred_fallthru
          _
      $region12: #{tpu_custom_call.1} parent=5 // pred_fallthru
        _
      %p187 = scmp.lt.s32.totalorder %s16, 4
      // Predicated region
      $region29: #{tpu_custom_call.1} parent=5 // pred_check
        %p188 = pneg %p187
      $region30: #{tpu_custom_call.1} parent=5 // pred_check_branch
        %190 = sbr.rel (%p188) target = $region32
      $region31: #{tpu_custom_call.1} parent=5 // pred_region
        _
      $region32: #{tpu_custom_call.1} parent=5 // pred_fallthru
        _
      %p191 = scmp.le.s32.totalorder 1, %s16
      %p192 = scmp.lt.s32.totalorder %s16, 5
      %p193 = pnand %p191, %p192
      %p194 = pneg %p193
      // Predicated region
      $region33: #{tpu_custom_call.1} parent=5 // pred_check
        _
      $region34: #{tpu_custom_call.1} parent=5 // pred_check_branch
        %196 = sbr.rel (%p193) target = $region36
      $region35: #{tpu_custom_call.1} parent=5 // pred_region
        %s197 = ssub.s32 %s16, 1
        // Predicated region
        $region37: #{tpu_custom_call.1} parent=35 // pred_check
          %p198 = pneg %p49
        $region38: #{tpu_custom_call.1} parent=35 // pred_check_branch
          %200 = sbr.rel (%p198) target = $region40
        $region39: #{tpu_custom_call.1} parent=35 // pred_region
          %201 = dma.done [#allocation5], 256
        $region40: #{tpu_custom_call.1} parent=35 // pred_fallthru
          _
        // Predicated region
        $region41: #{tpu_custom_call.1} parent=35 // pred_check
          %p202 = pneg %p91
        $region42: #{tpu_custom_call.1} parent=35 // pred_check_branch
          %204 = sbr.rel (%p202) target = $region44
        $region43: #{tpu_custom_call.1} parent=35 // pred_region
          %205 = dma.done [#allocation8], 2048
        $region44: #{tpu_custom_call.1} parent=35 // pred_fallthru
          _
        %p206 = pneg %p49
        %p207 = pneg %p46
        %p208 = pneg %p70
        %p209 = pneg %p67
        %p210 = pneg %p91
        %p211 = pneg %p88
        %p212 = pneg %p112
        %p213 = pneg %p109
        %p214 = pneg %p140
        %p215 = pneg %p137
        %s216 = sand.u32 %s127, 1
        %s217 = scalar_lea.sflag [#allocation6], %s216
        %s218 = sand.u32 %s127, 1
        %s219 = smul.addr %s218, 128
        %s220 = scalar_lea.vmem [#allocation9], %s219
        %s221 = smul.u32 8, %s26
        %p222 = scmp.lt.s32.totalorder %s26, 0
        %s223 = ssub.s32 0, %s26
        %s224 = scalar_select %p222, %s223, %s26
        %s225 = sand.u32 %s224, 1
        %s226 = ssub.s32 0, %s225
        %s227 = scalar_select %p222, %s226, %s225
        %p228 = scmp.eq.s32.totalorder %s26, 0
        // Predicated region
        $region45: #{tpu_custom_call.1} parent=35 // pred_check
          %p229 = pneg %p228
        $region46: #{tpu_custom_call.1} parent=35 // pred_check_branch
          %231 = sbr.rel (%p229) target = $region48
        $region47: #{tpu_custom_call.1} parent=35 // pred_region
          %s232 = smul.u32 %s26, 8
          %s233 = smul.u32 %s232, 24
          %s234 = smul.u32 %s25, 432
          %s235 = sadd.s32 %s233, %s234
          %s236 = smul.addr %s235, 16
          %s237 = scalar_lea.hbm %s0, %s236
          // Predicated region
          $region49: #{tpu_custom_call.1} parent=47 // pred_check
            _
          $region50: #{tpu_custom_call.1} parent=47 // pred_check_branch
            %239 = sbr.rel target = $region52
          $region51: #{tpu_custom_call.1} parent=47 // pred_region
            %240 = sst [smem:[#allocation12]] [#allocation11]
            %241 = sst [smem:[#allocation13]] [#allocation10]
          $region52: #{tpu_custom_call.1} parent=47 // pred_fallthru
            _
          %243 = shalt.err (0)
          %s245 = sshll.u32 [#allocation2], 4
          %s246 = int_to_ptr.vmem [resolvable:$true] %s245
          %248 = dma.hbm_to_vmem [thread:$0]  %s237, 3840, %s246, [#allocation3]
        $region48: #{tpu_custom_call.1} parent=35 // pred_fallthru
          _
        %s249 = sadd.s32 %s26, 1
        %p250 = scmp.lt.s32.totalorder %s249, 2
        // Predicated region
        $region53: #{tpu_custom_call.1} parent=35 // pred_check
          %p251 = pneg %p250
        $region54: #{tpu_custom_call.1} parent=35 // pred_check_branch
          %253 = sbr.rel (%p251) target = $region56
        $region55: #{tpu_custom_call.1} parent=35 // pred_region
          %s254 = ssub.s32 1, %s227
          %s255 = smul.u32 %s249, 8
          %s256 = smul.u32 %s255, 24
          %s257 = smul.u32 %s25, 432
          %s258 = sadd.s32 %s256, %s257
          %s259 = smul.addr %s258, 16
          %s260 = scalar_lea.hbm %s0, %s259
          %s261 = smul.u32 %s254, 240
          %s262 = scalar_lea.vmem [#allocation2], %s261
          %s263 = scalar_lea.sflag [#allocation3], %s254
          // Predicated region
          $region57: #{tpu_custom_call.1} parent=55 // pred_check
            _
          $region58: #{tpu_custom_call.1} parent=55 // pred_check_branch
            %265 = sbr.rel target = $region60
          $region59: #{tpu_custom_call.1} parent=55 // pred_region
            %266 = sst [smem:[#allocation12]] [#allocation15]
            %267 = sst [smem:[#allocation13]] [#allocation14]
          $region60: #{tpu_custom_call.1} parent=55 // pred_fallthru
            _
          %269 = shalt.err (0)
          %s271 = sshll.u32 %s262, 4
          %s272 = int_to_ptr.vmem [resolvable:$true] %s271
          %274 = dma.hbm_to_vmem [thread:$0]  %s260, 3840, %s272, %s263
        $region56: #{tpu_custom_call.1} parent=35 // pred_fallthru
          _
        %s275 = smul.u32 %s26, 8
        %s276 = smul.u32 %s227, 240
        %s277 = scalar_lea.vmem [#allocation2], %s276
        %s278 = scalar_lea.sflag [#allocation3], %s227
        %s279 = smul.u32 10, 24
        %s280 = smul.u32 %s279, 1
        %s281 = sshll.u32 %s280, 4
        %282 = dma.done %s278, %s281
        %v283 = vld [vmem:[%s277] sm:$0xff]
        %v284 = vld [vmem:[%s277 + $0x8] sm:$0xff]
        %v285 = vld [vmem:[%s277 + $0x10] sm:$0xff]
        %v286 = vld [vmem:[%s277 + $0x18] sm:$0xff]
        %v287 = vld [vmem:[%s277 + $0x20] sm:$0xff]
        %v288 = vld [vmem:[%s277 + $0x28] sm:$0xff]
        %v289 = vld [vmem:[%s277 + $0x30] sm:$0xff]
        %v290 = vld [vmem:[%s277 + $0x38] sm:$0xff]
        %v291 = vld [vmem:[%s277 + $0x40] sm:$0xff]
        %v292 = vld [vmem:[%s277 + $0x48] sm:$0xff]
        %v293 = vld [vmem:[%s277 + $0x50] sm:$0xff]
        %v294 = vld [vmem:[%s277 + $0x58] sm:$0xff]
        %v295 = vld [vmem:[%s277 + $0x60] sm:$0xff]
        %v296 = vld [vmem:[%s277 + $0x68] sm:$0xff]
        %v297 = vld [vmem:[%s277 + $0x70] sm:$0xff]
        %v298 = vld [vmem:[%s277 + $0x78] sm:$0xff]
        %v299 = vld [vmem:[%s277 + $0x80] sm:$0xff]
        %v300 = vld [vmem:[%s277 + $0x88] sm:$0xff]
        %v301 = vld [vmem:[%s277 + $0x90] sm:$0xff]
        %v302 = vld [vmem:[%s277 + $0x98] sm:$0xff]
        %v303 = vld [vmem:[%s277 + $0xa0] sm:$0xff]
        %v304 = vld [vmem:[%s277 + $0xa8] sm:$0xff]
        %v305 = vld [vmem:[%s277 + $0xb0] sm:$0xff]
        %v306 = vld [vmem:[%s277 + $0xb8] sm:$0xff]
        %v307 = vld [vmem:[%s277 + $0xc0] sm:$0xff]
        %v308 = vld [vmem:[%s277 + $0xc8] sm:$0xff]
        %v309 = vld [vmem:[%s277 + $0xd0] sm:$0xff]
        %v310 = vld [vmem:[%s277 + $0xd8] sm:$0xff]
        %v311 = vld [vmem:[%s277 + $0xe0] sm:$0xff]
        %v312 = vld [vmem:[%s277 + $0xe8] sm:$0xff]
        %v313 = vrot.slane %v283, 1
        %v314 = vrot.slane %v286, 1
        %v315 = vrot.slane %v289, 1
        %v316 = vrot.slane %v292, 1
        %v317 = vrot.slane %v295, 1
        %v318 = vrot.slane %v298, 1
        %v319 = vrot.slane %v301, 1
        %v320 = vrot.slane %v304, 1
        %v321 = vrot.slane %v307, 1
        %v322 = vrot.slane %v310, 1
        %v323 = vrot.slane %v284, 1
        %v324 = vrot.slane %v287, 1
        %v325 = vrot.slane %v290, 1
        %v326 = vrot.slane %v293, 1
        %v327 = vrot.slane %v296, 1
        %v328 = vrot.slane %v299, 1
        %v329 = vrot.slane %v302, 1
        %v330 = vrot.slane %v305, 1
        %v331 = vrot.slane %v308, 1
        %v332 = vrot.slane %v311, 1
        %v333 = vrot.slane %v285, 1
        %v334 = vrot.slane %v288, 1
        %v335 = vrot.slane %v291, 1
        %v336 = vrot.slane %v294, 1
        %v337 = vrot.slane %v297, 1
        %v338 = vrot.slane %v300, 1
        %v339 = vrot.slane %v303, 1
        %v340 = vrot.slane %v306, 1
        %v341 = vrot.slane %v309, 1
        %v342 = vrot.slane %v312, 1
        %v343 = vlaneseq
        %v344 = vshrl.u32 %v343, 7
        %vm345 = vcmp.lt.s32.totalorder %v344, 7
        %v346 = vsel %vm345, %v323, %v333
        %v347 = vsel %vm345, %v324, %v334
        %v348 = vsel %vm345, %v325, %v335
        %v349 = vsel %vm345, %v326, %v336
        %v350 = vsel %vm345, %v327, %v337
        %v351 = vsel %vm345, %v328, %v338
        %v352 = vsel %vm345, %v329, %v339
        %v353 = vsel %vm345, %v330, %v340
        %v354 = vsel %vm345, %v331, %v341
        %v355 = vsel %vm345, %v332, %v342
        %v356 = vsel %vm345, %v313, %v323
        %v357 = vsel %vm345, %v314, %v324
        %v358 = vsel %vm345, %v315, %v325
        %v359 = vsel %vm345, %v316, %v326
        %v360 = vsel %vm345, %v317, %v327
        %v361 = vsel %vm345, %v318, %v328
        %v362 = vsel %vm345, %v319, %v329
        %v363 = vsel %vm345, %v320, %v330
        %v364 = vsel %vm345, %v321, %v331
        %v365 = vsel %vm345, %v322, %v332
        %v366 = vrot.slane %v283, 2
        %v367 = vrot.slane %v286, 2
        %v368 = vrot.slane %v289, 2
        %v369 = vrot.slane %v292, 2
        %v370 = vrot.slane %v295, 2
        %v371 = vrot.slane %v298, 2
        %v372 = vrot.slane %v301, 2
        %v373 = vrot.slane %v304, 2
        %v374 = vrot.slane %v307, 2
        %v375 = vrot.slane %v310, 2
        %v376 = vrot.slane %v284, 2
        %v377 = vrot.slane %v287, 2
        %v378 = vrot.slane %v290, 2
        %v379 = vrot.slane %v293, 2
        %v380 = vrot.slane %v296, 2
        %v381 = vrot.slane %v299, 2
        %v382 = vrot.slane %v302, 2
        %v383 = vrot.slane %v305, 2
        %v384 = vrot.slane %v308, 2
        %v385 = vrot.slane %v311, 2
        %v386 = vrot.slane %v285, 2
        %v387 = vrot.slane %v288, 2
        %v388 = vrot.slane %v291, 2
        %v389 = vrot.slane %v294, 2
        %v390 = vrot.slane %v297, 2
        %v391 = vrot.slane %v300, 2
        %v392 = vrot.slane %v303, 2
        %v393 = vrot.slane %v306, 2
        %v394 = vrot.slane %v309, 2
        %v395 = vrot.slane %v312, 2
        %vm396 = vcmp.lt.s32.totalorder %v344, 6
        %v397 = vsel %vm396, %v376, %v386
        %v398 = vsel %vm396, %v377, %v387
        %v399 = vsel %vm396, %v378, %v388
        %v400 = vsel %vm396, %v379, %v389
        %v401 = vsel %vm396, %v380, %v390
        %v402 = vsel %vm396, %v381, %v391
        %v403 = vsel %vm396, %v382, %v392
        %v404 = vsel %vm396, %v383, %v393
        %v405 = vsel %vm396, %v384, %v394
        %v406 = vsel %vm396, %v385, %v395
        %v407 = vsel %vm396, %v366, %v376
        %v408 = vsel %vm396, %v367, %v377
        %v409 = vsel %vm396, %v368, %v378
        %v410 = vsel %vm396, %v369, %v379
        %v411 = vsel %vm396, %v370, %v380
        %v412 = vsel %vm396, %v371, %v381
        %v413 = vsel %vm396, %v372, %v382
        %v414 = vsel %vm396, %v373, %v383
        %v415 = vsel %vm396, %v374, %v384
        %v416 = vsel %vm396, %v375, %v385
        %v417 = vld [vmem:[#allocation4] sm:$0x1]
        %v418 = vlaneseq
        %v419 = vshrl.u32 %v418, 7
        %v420 = vsub.s32 0, %v419
        %v421 = vrot.slane %v417, %v420
        %v422 = vmul.f32 %v283, %v421
        %v423 = vmul.f32 %v284, %v421
        %v424 = vmul.f32 %v286, %v421
        %v425 = vmul.f32 %v287, %v421
        %v426 = vmul.f32 %v289, %v421
        %v427 = vmul.f32 %v290, %v421
        %v428 = vmul.f32 %v292, %v421
        %v429 = vmul.f32 %v293, %v421
        %v430 = vmul.f32 %v295, %v421
        %v431 = vmul.f32 %v296, %v421
        %v432 = vmul.f32 %v298, %v421
        %v433 = vmul.f32 %v299, %v421
        %v434 = vmul.f32 %v301, %v421
        %v435 = vmul.f32 %v302, %v421
        %v436 = vmul.f32 %v304, %v421
        %v437 = vmul.f32 %v305, %v421
        %v438 = vld [vmem:[#allocation4 + $0x1] sm:$0x1]
        %v439 = vlaneseq
        %v440 = vshrl.u32 %v439, 7
        %v441 = vsub.s32 0, %v440
        %v442 = vrot.slane %v438, %v441
        %v443 = vmul.f32 %v356, %v442
        %v444 = vmul.f32 %v346, %v442
        %v445 = vmul.f32 %v357, %v442
        %v446 = vmul.f32 %v347, %v442
        %v447 = vmul.f32 %v358, %v442
        %v448 = vmul.f32 %v348, %v442
        %v449 = vmul.f32 %v359, %v442
        %v450 = vmul.f32 %v349, %v442
        %v451 = vmul.f32 %v360, %v442
        %v452 = vmul.f32 %v350, %v442
        %v453 = vmul.f32 %v361, %v442
        %v454 = vmul.f32 %v351, %v442
        %v455 = vmul.f32 %v362, %v442
        %v456 = vmul.f32 %v352, %v442
        %v457 = vmul.f32 %v363, %v442
        %v458 = vmul.f32 %v353, %v442
        %v459 = vadd.f32 %v422, %v443
        %v460 = vadd.f32 %v423, %v444
        %v461 = vadd.f32 %v424, %v445
        %v462 = vadd.f32 %v425, %v446
        %v463 = vadd.f32 %v426, %v447
        %v464 = vadd.f32 %v427, %v448
        %v465 = vadd.f32 %v428, %v449
        %v466 = vadd.f32 %v429, %v450
        %v467 = vadd.f32 %v430, %v451
        %v468 = vadd.f32 %v431, %v452
        %v469 = vadd.f32 %v432, %v453
        %v470 = vadd.f32 %v433, %v454
        %v471 = vadd.f32 %v434, %v455
        %v472 = vadd.f32 %v435, %v456
        %v473 = vadd.f32 %v436, %v457
        %v474 = vadd.f32 %v437, %v458
        %v475 = vld [vmem:[#allocation4 + $0x2] sm:$0x1]
        %v476 = vlaneseq
        %v477 = vshrl.u32 %v476, 7
        %v478 = vsub.s32 0, %v477
        %v479 = vrot.slane %v475, %v478
        %v480 = vmul.f32 %v407, %v479
        %v481 = vmul.f32 %v397, %v479
        %v482 = vmul.f32 %v408, %v479
        %v483 = vmul.f32 %v398, %v479
        %v484 = vmul.f32 %v409, %v479
        %v485 = vmul.f32 %v399, %v479
        %v486 = vmul.f32 %v410, %v479
        %v487 = vmul.f32 %v400, %v479
        %v488 = vmul.f32 %v411, %v479
        %v489 = vmul.f32 %v401, %v479
        %v490 = vmul.f32 %v412, %v479
        %v491 = vmul.f32 %v402, %v479
        %v492 = vmul.f32 %v413, %v479
        %v493 = vmul.f32 %v403, %v479
        %v494 = vmul.f32 %v414, %v479
        %v495 = vmul.f32 %v404, %v479
        %v496 = vadd.f32 %v459, %v480
        %v497 = vadd.f32 %v460, %v481
        %v498 = vadd.f32 %v461, %v482
        %v499 = vadd.f32 %v462, %v483
        %v500 = vadd.f32 %v463, %v484
        %v501 = vadd.f32 %v464, %v485
        %v502 = vadd.f32 %v465, %v486
        %v503 = vadd.f32 %v466, %v487
        %v504 = vadd.f32 %v467, %v488
        %v505 = vadd.f32 %v468, %v489
        %v506 = vadd.f32 %v469, %v490
        %v507 = vadd.f32 %v470, %v491
        %v508 = vadd.f32 %v471, %v492
        %v509 = vadd.f32 %v472, %v493
        %v510 = vadd.f32 %v473, %v494
        %v511 = vadd.f32 %v474, %v495
        %v512 = vld [vmem:[#allocation4 + $0x3] sm:$0x1]
        %v513 = vlaneseq
        %v514 = vshrl.u32 %v513, 7
        %v515 = vsub.s32 0, %v514
        %v516 = vrot.slane %v512, %v515
        %v517 = vmul.f32 %v286, %v516
        %v518 = vmul.f32 %v287, %v516
        %v519 = vmul.f32 %v289, %v516
        %v520 = vmul.f32 %v290, %v516
        %v521 = vmul.f32 %v292, %v516
        %v522 = vmul.f32 %v293, %v516
        %v523 = vmul.f32 %v295, %v516
        %v524 = vmul.f32 %v296, %v516
        %v525 = vmul.f32 %v298, %v516
        %v526 = vmul.f32 %v299, %v516
        %v527 = vmul.f32 %v301, %v516
        %v528 = vmul.f32 %v302, %v516
        %v529 = vmul.f32 %v304, %v516
        %v530 = vmul.f32 %v305, %v516
        %v531 = vmul.f32 %v307, %v516
        %v532 = vmul.f32 %v308, %v516
        %v533 = vadd.f32 %v496, %v517
        %v534 = vadd.f32 %v497, %v518
        %v535 = vadd.f32 %v498, %v519
        %v536 = vadd.f32 %v499, %v520
        %v537 = vadd.f32 %v500, %v521
        %v538 = vadd.f32 %v501, %v522
        %v539 = vadd.f32 %v502, %v523
        %v540 = vadd.f32 %v503, %v524
        %v541 = vadd.f32 %v504, %v525
        %v542 = vadd.f32 %v505, %v526
        %v543 = vadd.f32 %v506, %v527
        %v544 = vadd.f32 %v507, %v528
        %v545 = vadd.f32 %v508, %v529
        %v546 = vadd.f32 %v509, %v530
        %v547 = vadd.f32 %v510, %v531
        %v548 = vadd.f32 %v511, %v532
        %v549 = vld [vmem:[#allocation4 + $0x4] sm:$0x1]
        %v550 = vlaneseq
        %v551 = vshrl.u32 %v550, 7
        %v552 = vsub.s32 0, %v551
        %v553 = vrot.slane %v549, %v552
        %v554 = vmul.f32 %v357, %v553
        %v555 = vmul.f32 %v347, %v553
        %v556 = vmul.f32 %v358, %v553
        %v557 = vmul.f32 %v348, %v553
        %v558 = vmul.f32 %v359, %v553
        %v559 = vmul.f32 %v349, %v553
        %v560 = vmul.f32 %v360, %v553
        %v561 = vmul.f32 %v350, %v553
        %v562 = vmul.f32 %v361, %v553
        %v563 = vmul.f32 %v351, %v553
        %v564 = vmul.f32 %v362, %v553
        %v565 = vmul.f32 %v352, %v553
        %v566 = vmul.f32 %v363, %v553
        %v567 = vmul.f32 %v353, %v553
        %v568 = vmul.f32 %v364, %v553
        %v569 = vmul.f32 %v354, %v553
        %v570 = vadd.f32 %v533, %v554
        %v571 = vadd.f32 %v534, %v555
        %v572 = vadd.f32 %v535, %v556
        %v573 = vadd.f32 %v536, %v557
        %v574 = vadd.f32 %v537, %v558
        %v575 = vadd.f32 %v538, %v559
        %v576 = vadd.f32 %v539, %v560
        %v577 = vadd.f32 %v540, %v561
        %v578 = vadd.f32 %v541, %v562
        %v579 = vadd.f32 %v542, %v563
        %v580 = vadd.f32 %v543, %v564
        %v581 = vadd.f32 %v544, %v565
        %v582 = vadd.f32 %v545, %v566
        %v583 = vadd.f32 %v546, %v567
        %v584 = vadd.f32 %v547, %v568
        %v585 = vadd.f32 %v548, %v569
        %v586 = vld [vmem:[#allocation4 + $0x5] sm:$0x1]
        %v587 = vlaneseq
        %v588 = vshrl.u32 %v587, 7
        %v589 = vsub.s32 0, %v588
        %v590 = vrot.slane %v586, %v589
        %v591 = vmul.f32 %v408, %v590
        %v592 = vmul.f32 %v398, %v590
        %v593 = vmul.f32 %v409, %v590
        %v594 = vmul.f32 %v399, %v590
        %v595 = vmul.f32 %v410, %v590
        %v596 = vmul.f32 %v400, %v590
        %v597 = vmul.f32 %v411, %v590
        %v598 = vmul.f32 %v401, %v590
        %v599 = vmul.f32 %v412, %v590
        %v600 = vmul.f32 %v402, %v590
        %v601 = vmul.f32 %v413, %v590
        %v602 = vmul.f32 %v403, %v590
        %v603 = vmul.f32 %v414, %v590
        %v604 = vmul.f32 %v404, %v590
        %v605 = vmul.f32 %v415, %v590
        %v606 = vmul.f32 %v405, %v590
        %v607 = vadd.f32 %v570, %v591
        %v608 = vadd.f32 %v571, %v592
        %v609 = vadd.f32 %v572, %v593
        %v610 = vadd.f32 %v573, %v594
        %v611 = vadd.f32 %v574, %v595
        %v612 = vadd.f32 %v575, %v596
        %v613 = vadd.f32 %v576, %v597
        %v614 = vadd.f32 %v577, %v598
        %v615 = vadd.f32 %v578, %v599
        %v616 = vadd.f32 %v579, %v600
        %v617 = vadd.f32 %v580, %v601
        %v618 = vadd.f32 %v581, %v602
        %v619 = vadd.f32 %v582, %v603
        %v620 = vadd.f32 %v583, %v604
        %v621 = vadd.f32 %v584, %v605
        %v622 = vadd.f32 %v585, %v606
        %v623 = vld [vmem:[#allocation4 + $0x6] sm:$0x1]
        %v624 = vlaneseq
        %v625 = vshrl.u32 %v624, 7
        %v626 = vsub.s32 0, %v625
        %v627 = vrot.slane %v623, %v626
        %v628 = vmul.f32 %v289, %v627
        %v629 = vmul.f32 %v290, %v627
        %v630 = vmul.f32 %v292, %v627
        %v631 = vmul.f32 %v293, %v627
        %v632 = vmul.f32 %v295, %v627
        %v633 = vmul.f32 %v296, %v627
        %v634 = vmul.f32 %v298, %v627
        %v635 = vmul.f32 %v299, %v627
        %v636 = vmul.f32 %v301, %v627
        %v637 = vmul.f32 %v302, %v627
        %v638 = vmul.f32 %v304, %v627
        %v639 = vmul.f32 %v305, %v627
        %v640 = vmul.f32 %v307, %v627
        %v641 = vmul.f32 %v308, %v627
        %v642 = vmul.f32 %v310, %v627
        %v643 = vmul.f32 %v311, %v627
        %v644 = vadd.f32 %v607, %v628
        %v645 = vadd.f32 %v608, %v629
        %v646 = vadd.f32 %v609, %v630
        %v647 = vadd.f32 %v610, %v631
        %v648 = vadd.f32 %v611, %v632
        %v649 = vadd.f32 %v612, %v633
        %v650 = vadd.f32 %v613, %v634
        %v651 = vadd.f32 %v614, %v635
        %v652 = vadd.f32 %v615, %v636
        %v653 = vadd.f32 %v616, %v637
        %v654 = vadd.f32 %v617, %v638
        %v655 = vadd.f32 %v618, %v639
        %v656 = vadd.f32 %v619, %v640
        %v657 = vadd.f32 %v620, %v641
        %v658 = vadd.f32 %v621, %v642
        %v659 = vadd.f32 %v622, %v643
        %v660 = vld [vmem:[#allocation4 + $0x7] sm:$0x1]
        %v661 = vlaneseq
        %v662 = vshrl.u32 %v661, 7
        %v663 = vsub.s32 0, %v662
        %v664 = vrot.slane %v660, %v663
        %v665 = vmul.f32 %v358, %v664
        %v666 = vmul.f32 %v348, %v664
        %v667 = vmul.f32 %v359, %v664
        %v668 = vmul.f32 %v349, %v664
        %v669 = vmul.f32 %v360, %v664
        %v670 = vmul.f32 %v350, %v664
        %v671 = vmul.f32 %v361, %v664
        %v672 = vmul.f32 %v351, %v664
        %v673 = vmul.f32 %v362, %v664
        %v674 = vmul.f32 %v352, %v664
        %v675 = vmul.f32 %v363, %v664
        %v676 = vmul.f32 %v353, %v664
        %v677 = vmul.f32 %v364, %v664
        %v678 = vmul.f32 %v354, %v664
        %v679 = vmul.f32 %v365, %v664
        %v680 = vmul.f32 %v355, %v664
        %v681 = vadd.f32 %v644, %v665
        %v682 = vadd.f32 %v645, %v666
        %v683 = vadd.f32 %v646, %v667
        %v684 = vadd.f32 %v647, %v668
        %v685 = vadd.f32 %v648, %v669
        %v686 = vadd.f32 %v649, %v670
        %v687 = vadd.f32 %v650, %v671
        %v688 = vadd.f32 %v651, %v672
        %v689 = vadd.f32 %v652, %v673
        %v690 = vadd.f32 %v653, %v674
        %v691 = vadd.f32 %v654, %v675
        %v692 = vadd.f32 %v655, %v676
        %v693 = vadd.f32 %v656, %v677
        %v694 = vadd.f32 %v657, %v678
        %v695 = vadd.f32 %v658, %v679
        %v696 = vadd.f32 %v659, %v680
        %v697 = vld [vmem:[#allocation4 + $0x8] sm:$0x1]
        %v698 = vlaneseq
        %v699 = vshrl.u32 %v698, 7
        %v700 = vsub.s32 0, %v699
        %v701 = vrot.slane %v697, %v700
        %v702 = vmul.f32 %v409, %v701
        %v703 = vmul.f32 %v399, %v701
        %v704 = vmul.f32 %v410, %v701
        %v705 = vmul.f32 %v400, %v701
        %v706 = vmul.f32 %v411, %v701
        %v707 = vmul.f32 %v401, %v701
        %v708 = vmul.f32 %v412, %v701
        %v709 = vmul.f32 %v402, %v701
        %v710 = vmul.f32 %v413, %v701
        %v711 = vmul.f32 %v403, %v701
        %v712 = vmul.f32 %v414, %v701
        %v713 = vmul.f32 %v404, %v701
        %v714 = vmul.f32 %v415, %v701
        %v715 = vmul.f32 %v405, %v701
        %v716 = vmul.f32 %v416, %v701
        %v717 = vmul.f32 %v406, %v701
        %v718 = vadd.f32 %v681, %v702
        %v719 = vadd.f32 %v682, %v703
        %v720 = vadd.f32 %v683, %v704
        %v721 = vadd.f32 %v684, %v705
        %v722 = vadd.f32 %v685, %v706
        %v723 = vadd.f32 %v686, %v707
        %v724 = vadd.f32 %v687, %v708
        %v725 = vadd.f32 %v688, %v709
        %v726 = vadd.f32 %v689, %v710
        %v727 = vadd.f32 %v690, %v711
        %v728 = vadd.f32 %v691, %v712
        %v729 = vadd.f32 %v692, %v713
        %v730 = vadd.f32 %v693, %v714
        %v731 = vadd.f32 %v694, %v715
        %v732 = vadd.f32 %v695, %v716
        %v733 = vadd.f32 %v696, %v717
        %v734 = vld [vmem:[%s2] sm:$0x1]
        %v736 = vlaneseq
        %v737 = vshrl.u32 %v736, 7
        %v738 = vsub.s32 0, %v737
        %v739 = vrot.slane %v734, %v738
        %v741 = vadd.f32 %v718, %v739
        %v742 = vadd.f32 %v719, %v739
        %v743 = vadd.f32 %v720, %v739
        %v744 = vadd.f32 %v721, %v739
        %v745 = vadd.f32 %v722, %v739
        %v746 = vadd.f32 %v723, %v739
        %v747 = vadd.f32 %v724, %v739
        %v748 = vadd.f32 %v725, %v739
        %v749 = vadd.f32 %v726, %v739
        %v750 = vadd.f32 %v727, %v739
        %v751 = vadd.f32 %v728, %v739
        %v752 = vadd.f32 %v729, %v739
        %v753 = vadd.f32 %v730, %v739
        %v754 = vadd.f32 %v731, %v739
        %v755 = vadd.f32 %v732, %v739
        %v756 = vadd.f32 %v733, %v739
        %v757 = vmax.f32 %v741, 0.0
        %v758 = vmax.f32 %v742, 0.0
        %v759 = vmax.f32 %v743, 0.0
        %v760 = vmax.f32 %v744, 0.0
        %v761 = vmax.f32 %v745, 0.0
        %v762 = vmax.f32 %v746, 0.0
        %v763 = vmax.f32 %v747, 0.0
        %v764 = vmax.f32 %v748, 0.0
        %v765 = vmax.f32 %v749, 0.0
        %v766 = vmax.f32 %v750, 0.0
        %v767 = vmax.f32 %v751, 0.0
        %v768 = vmax.f32 %v752, 0.0
        %v769 = vmax.f32 %v753, 0.0
        %v770 = vmax.f32 %v754, 0.0
        %v771 = vmax.f32 %v755, 0.0
        %v772 = vmax.f32 %v756, 0.0
        %v773 = vld [vmem:[#allocation7] sm:$0xff]
        %v774 = vld [vmem:[#allocation7 + $0x8] sm:$0xff]
        %v775 = vld [vmem:[#allocation7 + $0x10] sm:$0xff]
        %v776 = vld [vmem:[#allocation7 + $0x18] sm:$0xff]
        %v777 = vld [vmem:[#allocation7 + $0x20] sm:$0xff]
        %v778 = vld [vmem:[#allocation7 + $0x28] sm:$0xff]
        %v779 = vld [vmem:[#allocation7 + $0x30] sm:$0xff]
        %v780 = vld [vmem:[#allocation7 + $0x38] sm:$0xff]
        %v781 = vld [vmem:[#allocation7 + $0x40] sm:$0xff]
        %v782 = vld [vmem:[#allocation7 + $0x48] sm:$0xff]
        %v783 = vld [vmem:[#allocation7 + $0x50] sm:$0xff]
        %v784 = vld [vmem:[#allocation7 + $0x58] sm:$0xff]
        %v785 = vld [vmem:[#allocation7 + $0x60] sm:$0xff]
        %v786 = vld [vmem:[#allocation7 + $0x68] sm:$0xff]
        %v787 = vld [vmem:[#allocation7 + $0x70] sm:$0xff]
        %v788 = vld [vmem:[#allocation7 + $0x78] sm:$0xff]
        %v789 = vld [vmem:[%s4] sm:$0x1]
        %v791 = vlaneseq
        %v792 = vshrl.u32 %v791, 7
        %v793 = vsub.s32 0, %v792
        %v794 = vrot.slane %v789, %v793
        %796 = vmatprep.subr.mxu0 0.0
        %797 = vmatpush1.msra.mxu0 %v773
        %798 = vmatprep.subr.mxu0 0.0
        %799 = vmatpush1.msra.mxu0 %v774
        %800 = vmatprep.subr.mxu0 0.0
        %801 = vmatpush1.msra.mxu0 %v775
        %802 = vmatprep.subr.mxu0 0.0
        %803 = vmatpush1.msra.mxu0 %v776
        %804 = vmatprep.subr.mxu0 0.0
        %805 = vmatpush1.msra.mxu0 %v777
        %806 = vmatprep.subr.mxu0 0.0
        %807 = vmatpush1.msra.mxu0 %v778
        %808 = vmatprep.subr.mxu0 0.0
        %809 = vmatpush1.msra.mxu0 %v779
        %810 = vmatprep.subr.mxu0 0.0
        %811 = vmatpush1.msra.mxu0 %v780
        %812 = vmatprep.subr.mxu0 0.0
        %813 = vmatpush1.msra.mxu0 %v781
        %814 = vmatprep.subr.mxu0 0.0
        %815 = vmatpush1.msra.mxu0 %v782
        %816 = vmatprep.subr.mxu0 0.0
        %817 = vmatpush1.msra.mxu0 %v783
        %818 = vmatprep.subr.mxu0 0.0
        %819 = vmatpush1.msra.mxu0 %v784
        %820 = vmatprep.subr.mxu0 0.0
        %821 = vmatpush1.msra.mxu0 %v785
        %822 = vmatprep.subr.mxu0 0.0
        %823 = vmatpush1.msra.mxu0 %v786
        %824 = vmatprep.subr.mxu0 0.0
        %825 = vmatpush1.msra.mxu0 %v787
        %826 = vmatprep.subr.mxu0 0.0
        %827 = vmatpush1.msra.mxu0 %v788
        %828 = vmatprep.subr.mxu0 0.0
        %829 = vmatpush1.msra.mxu0 0.0
        %830 = vmatprep.subr.mxu0 0.0
        %831 = vmatpush1.msra.mxu0 0.0
        %832 = vmatprep.subr.mxu0 0.0
        %833 = vmatpush1.msra.mxu0 0.0
        %834 = vmatprep.subr.mxu0 0.0
        %835 = vmatpush1.msra.mxu0 0.0
        %836 = vmatprep.subr.mxu0 0.0
        %837 = vmatpush1.msra.mxu0 0.0
        %838 = vmatprep.subr.mxu0 0.0
        %839 = vmatpush1.msra.mxu0 0.0
        %840 = vmatprep.subr.mxu0 0.0
        %841 = vmatpush1.msra.mxu0 0.0
        %842 = vmatprep.subr.mxu0 0.0
        %843 = vmatpush1.msra.mxu0 0.0
        %844 = vmatprep.subr.mxu0 0.0
        %845 = vmatpush1.msra.mxu0 0.0
        %846 = vmatprep.subr.mxu0 0.0
        %847 = vmatpush1.msra.mxu0 0.0
        %848 = vmatprep.subr.mxu0 0.0
        %849 = vmatpush1.msra.mxu0 0.0
        %850 = vmatprep.subr.mxu0 0.0
        %851 = vmatpush1.msra.mxu0 0.0
        %852 = vmatprep.subr.mxu0 0.0
        %853 = vmatpush1.msra.mxu0 0.0
        %854 = vmatprep.subr.mxu0 0.0
        %855 = vmatpush1.msra.mxu0 0.0
        %856 = vmatprep.subr.mxu0 0.0
        %857 = vmatpush1.msra.mxu0 0.0
        %858 = vmatprep.subr.mxu0 0.0
        %859 = vmatpush1.msra.mxu0 0.0
        %860 = vmatprep.mubr.f32.mxu0 0.0
        %861 = vmatmul.mubr.f32.gmra.mrb[0].mxu0 %v757
        %v862 = vpop.f32.mrb[0].mxu0
        %v863 = vadd.f32 %v794, %v862
        %v864 = vpop.f32.mrb[0].mxu0
        %865 = vmatprep.mubr.f32.mxu0 0.0
        %866 = vmatmul.mubr.f32.gmra.mrb[0].mxu0 %v758
        %v867 = vpop.f32.mrb[0].mxu0
        %v868 = vadd.f32 %v794, %v867
        %v869 = vpop.f32.mrb[0].mxu0
        %870 = vmatprep.mubr.f32.mxu0 0.0
        %871 = vmatmul.mubr.f32.gmra.mrb[0].mxu0 %v759
        %v872 = vpop.f32.mrb[0].mxu0
        %v873 = vadd.f32 %v794, %v872
        %v874 = vpop.f32.mrb[0].mxu0
        %875 = vmatprep.mubr.f32.mxu0 0.0
        %876 = vmatmul.mubr.f32.gmra.mrb[0].mxu0 %v760
        %v877 = vpop.f32.mrb[0].mxu0
        %v878 = vadd.f32 %v794, %v877
        %v879 = vpop.f32.mrb[0].mxu0
        %880 = vmatprep.mubr.f32.mxu0 0.0
        %881 = vmatmul.mubr.f32.gmra.mrb[0].mxu0 %v761
        %v882 = vpop.f32.mrb[0].mxu0
        %v883 = vadd.f32 %v794, %v882
        %v884 = vpop.f32.mrb[0].mxu0
        %885 = vmatprep.mubr.f32.mxu0 0.0
        %886 = vmatmul.mubr.f32.gmra.mrb[0].mxu0 %v762
        %v887 = vpop.f32.mrb[0].mxu0
        %v888 = vadd.f32 %v794, %v887
        %v889 = vpop.f32.mrb[0].mxu0
        %890 = vmatprep.mubr.f32.mxu0 0.0
        %891 = vmatmul.mubr.f32.gmra.mrb[0].mxu0 %v763
        %v892 = vpop.f32.mrb[0].mxu0
        %v893 = vadd.f32 %v794, %v892
        %v894 = vpop.f32.mrb[0].mxu0
        %895 = vmatprep.mubr.f32.mxu0 0.0
        %896 = vmatmul.mubr.f32.gmra.mrb[0].mxu0 %v764
        %v897 = vpop.f32.mrb[0].mxu0
        %v898 = vadd.f32 %v794, %v897
        %v899 = vpop.f32.mrb[0].mxu0
        %900 = vmatprep.mubr.f32.mxu0 0.0
        %901 = vmatmul.mubr.f32.gmra.mrb[0].mxu0 %v765
        %v902 = vpop.f32.mrb[0].mxu0
        %v903 = vadd.f32 %v794, %v902
        %v904 = vpop.f32.mrb[0].mxu0
        %905 = vmatprep.mubr.f32.mxu0 0.0
        %906 = vmatmul.mubr.f32.gmra.mrb[0].mxu0 %v766
        %v907 = vpop.f32.mrb[0].mxu0
        %v908 = vadd.f32 %v794, %v907
        %v909 = vpop.f32.mrb[0].mxu0
        %910 = vmatprep.mubr.f32.mxu0 0.0
        %911 = vmatmul.mubr.f32.gmra.mrb[0].mxu0 %v767
        %v912 = vpop.f32.mrb[0].mxu0
        %v913 = vadd.f32 %v794, %v912
        %v914 = vpop.f32.mrb[0].mxu0
        %915 = vmatprep.mubr.f32.mxu0 0.0
        %916 = vmatmul.mubr.f32.gmra.mrb[0].mxu0 %v768
        %v917 = vpop.f32.mrb[0].mxu0
        %v918 = vadd.f32 %v794, %v917
        %v919 = vpop.f32.mrb[0].mxu0
        %920 = vmatprep.mubr.f32.mxu0 0.0
        %921 = vmatmul.mubr.f32.gmra.mrb[0].mxu0 %v769
        %v922 = vpop.f32.mrb[0].mxu0
        %v923 = vadd.f32 %v794, %v922
        %v924 = vpop.f32.mrb[0].mxu0
        %925 = vmatprep.mubr.f32.mxu0 0.0
        %926 = vmatmul.mubr.f32.gmra.mrb[0].mxu0 %v770
        %v927 = vpop.f32.mrb[0].mxu0
        %v928 = vadd.f32 %v794, %v927
        %v929 = vpop.f32.mrb[0].mxu0
        %930 = vmatprep.mubr.f32.mxu0 0.0
        %931 = vmatmul.mubr.f32.gmra.mrb[0].mxu0 %v771
        %v932 = vpop.f32.mrb[0].mxu0
        %v933 = vadd.f32 %v794, %v932
        %v934 = vpop.f32.mrb[0].mxu0
        %935 = vmatprep.mubr.f32.mxu0 0.0
        %936 = vmatmul.mubr.f32.gmra.mrb[0].mxu0 %v772
        %v937 = vpop.f32.mrb[0].mxu0
        %v938 = vadd.f32 %v794, %v937
        %v939 = vpop.f32.mrb[0].mxu0
        %940 = vdwg.mxu0
        %v941 = vmax.f32 %v863, 0.0
        %v942 = vmax.f32 %v868, 0.0
        %v943 = vmax.f32 %v873, 0.0
        %v944 = vmax.f32 %v878, 0.0
        %v945 = vmax.f32 %v883, 0.0
        %v946 = vmax.f32 %v888, 0.0
        %v947 = vmax.f32 %v893, 0.0
        %v948 = vmax.f32 %v898, 0.0
        %v949 = vmax.f32 %v903, 0.0
        %v950 = vmax.f32 %v908, 0.0
        %v951 = vmax.f32 %v913, 0.0
        %v952 = vmax.f32 %v918, 0.0
        %v953 = vmax.f32 %v923, 0.0
        %v954 = vmax.f32 %v928, 0.0
        %v955 = vmax.f32 %v933, 0.0
        %v956 = vmax.f32 %v938, 0.0
        %957 = vst [vmem:[%s220] sm:$0xff] %v941
        %958 = vst [vmem:[%s220 + $0x8] sm:$0xff] %v942
        %959 = vst [vmem:[%s220 + $0x10] sm:$0xff] %v943
        %960 = vst [vmem:[%s220 + $0x18] sm:$0xff] %v944
        %961 = vst [vmem:[%s220 + $0x20] sm:$0xff] %v945
        %962 = vst [vmem:[%s220 + $0x28] sm:$0xff] %v946
        %963 = vst [vmem:[%s220 + $0x30] sm:$0xff] %v947
        %964 = vst [vmem:[%s220 + $0x38] sm:$0xff] %v948
        %965 = vst [vmem:[%s220 + $0x40] sm:$0xff] %v949
        %966 = vst [vmem:[%s220 + $0x48] sm:$0xff] %v950
        %967 = vst [vmem:[%s220 + $0x50] sm:$0xff] %v951
        %968 = vst [vmem:[%s220 + $0x58] sm:$0xff] %v952
        %969 = vst [vmem:[%s220 + $0x60] sm:$0xff] %v953
        %970 = vst [vmem:[%s220 + $0x68] sm:$0xff] %v954
        %971 = vst [vmem:[%s220 + $0x70] sm:$0xff] %v955
        %972 = vst [vmem:[%s220 + $0x78] sm:$0xff] %v956
        %s973 = sand.u32 %s127, 1
        %s974 = scalar_lea.sflag [#allocation6], %s973
        %s975 = sand.u32 %s127, 1
        %s976 = smul.addr %s975, 128
        %s977 = scalar_lea.vmem [#allocation9], %s976
        // Predicated region
        $region61: #{tpu_custom_call.1} parent=35 // pred_check
          %p978 = pneg %p137
        $region62: #{tpu_custom_call.1} parent=35 // pred_check_branch
          %980 = sbr.rel (%p978) target = $region64
        $region63: #{tpu_custom_call.1} parent=35 // pred_region
          %s981 = smul.u32 8, %s26
          %s983 = ssub.s32 2048, 2048
          %984 = vsyncadd %s974, %s983
          %s985 = smul.addr %s981, 2
          %s986 = smul.addr %s25, 32
          %s987 = sadd.s32 %s985, %s986
          %s988 = smul.addr %s987, 128
          %s989 = scalar_lea.hbm %s5, %s988
          %s990 = sshll.u32 %s977, 4
          %s991 = int_to_ptr.vmem [resolvable:$true] %s990
          %996 = dma.vmem_to_hbm [thread:$0]  %s991, 2048, %s989, %s974, 128, 128, 8
        $region64: #{tpu_custom_call.1} parent=35 // pred_fallthru
          _
      $region36: #{tpu_custom_call.1} parent=5 // pred_fallthru
        _
      %p997 = scmp.le.s32.totalorder 2, %s16
      // Predicated region
      $region65: #{tpu_custom_call.1} parent=5 // pred_check
        %p998 = pneg %p997
      $region66: #{tpu_custom_call.1} parent=5 // pred_check_branch
        %1000 = sbr.rel (%p998) target = $region68
      $region67: #{tpu_custom_call.1} parent=5 // pred_region
        %s1001 = ssub.s32 %s16, 2
        // Predicated region
        $region69: #{tpu_custom_call.1} parent=67 // pred_check
          %p1002 = pneg %p143
        $region70: #{tpu_custom_call.1} parent=67 // pred_check_branch
          %1004 = sbr.rel (%p1002) target = $region72
        $region71: #{tpu_custom_call.1} parent=67 // pred_region
          %s1005 = sand.u32 %s128, 1
          %s1006 = scalar_lea.sflag [#allocation6], %s1005
          %s1007 = sand.u32 %s128, 1
          %s1008 = smul.addr %s1007, 128
          %s1009 = scalar_lea.vmem [#allocation9], %s1008
          %1010 = dma.done %s1006, 2048
        $region72: #{tpu_custom_call.1} parent=67 // pred_fallthru
          _
      $region68: #{tpu_custom_call.1} parent=5 // pred_fallthru
        _
    $region6: #{tpu_custom_call.1} parent=1 // loop_footer
      %s20 = sadd.s32 1, %s16
    $region7: #{tpu_custom_call.1} parent=1 // loop_footer_branch
      %15 = sbr.rel target = $region3
    $region8: #{tpu_custom_call.1} parent=1 // loop_exit
      _
    %1011 = vsyncpa [#allocation5], 1
    %s1012 = scalar_lea.sflag [#allocation5], 1
    %1013 = vsyncpa %s1012, 1
    %1014 = vsyncpa [#allocation8], 1
    %1015 = vsyncpa [#allocation6], 1
    %s1016 = scalar_lea.sflag [#allocation6], 1
    %1017 = vsyncpa %s1016, 1
  %1018 = vsyncmov [#allocation3]
  %s1019 = vpop.sfrf %1018
  %p1020 = scmp.eq.s32.totalorder %s1019, 0
  %p1021 = pneg %p1020
  %1023 = shalt.err (%p1021)
  %s1024 = scalar_lea.sflag [#allocation3], 1
  %1025 = vsyncmov %s1024
  %s1026 = vpop.sfrf %1025
  %p1027 = scmp.eq.s32.totalorder %s1026, 0
  %p1028 = pneg %p1027
  %1030 = shalt.err (%p1028)

</llo_original>
